<compile_context>
chip_gen: v7x
topology: tpu7x:2x2x1
jax: 0.10.0
libtpu: 0.0.40
codegen_flags: <defaults>
</compile_context>

<pallas_src>
import math

import jax
import jax.numpy as jnp
from jax.experimental import pallas as pl
from jax.experimental.pallas import tpu as pltpu


# ---------------------------------------------------------------------------
# Stage 1: value projection + padding mask (hoisted; runs once per batch sample)
# ---------------------------------------------------------------------------
def _make_value_kernel():
    def kernel(x_ref, m_ref, wv_ref, bv_ref, v_ref):
        x = x_ref[0]                                           # (Lin, C) f32
        v = jnp.dot(x.astype(jnp.bfloat16), wv_ref[...],
                    preferred_element_type=jnp.float32) + bv_ref[...]
        v = v * (1.0 - m_ref[0])                               # masked_fill(padding, 0)
        v_ref[0] = v.astype(jnp.bfloat16)
    return kernel


# ---------------------------------------------------------------------------
# Stage 2: deformable sampling + output projection (grid over batch x Lq tiles)
# ---------------------------------------------------------------------------
def _make_main_kernel(TQ, C, H, L, P, shapes_list, starts_list):
    Dh = C // H

    def kernel(q_ref, ref_ref, v_ref,
               woff_ref, boff_ref, wattn_ref, battn_ref, wo_ref, bo_ref,
               out_ref):
        q = q_ref[0]                                           # (TQ, C)  f32
        refs = ref_ref[0]                                      # (TQ, 2L) f32
        v = v_ref[0]                                           # (Lin, C) bf16

        # Small linears (kept f32: negligible MXU cost, avoids offset drift).
        off = jnp.dot(q, woff_ref[...],
                      preferred_element_type=jnp.float32) + boff_ref[...]      # (TQ, H*L*P*2)
        aw = jnp.dot(q, wattn_ref[...],
                     preferred_element_type=jnp.float32) + battn_ref[...]      # (TQ, H*L*P)

        # Per-head softmax over levels*points; divide goes to the EUP slot.
        aw_heads = []
        for h in range(H):
            a_h = aw[:, h * L * P:(h + 1) * L * P]
            a_h = a_h - jnp.max(a_h, axis=-1, keepdims=True)
            e = jnp.exp(a_h)
            aw_heads.append(
                e * pl.reciprocal(jnp.sum(e, axis=-1, keepdims=True), approx=True))

        head_accs = [jnp.zeros((TQ, Dh), jnp.float32) for _ in range(H)]
        for l in range(L):
            Hl, Wl = shapes_list[l]
            start = starts_list[l]
            HW = Hl * Wl
            col = jax.lax.broadcasted_iota(jnp.int32, (TQ, HW), 1)
            # ix = (rx + ox/Wl)*Wl - 0.5 == rx*Wl + ox - 0.5 ; hoisted per level.
            ix_base = refs[:, 2 * l:2 * l + 1] * float(Wl) - 0.5
            iy_base = refs[:, 2 * l + 1:2 * l + 2] * float(Hl) - 0.5
            for h in range(H):
                S = jnp.zeros((TQ, HW), jnp.float32)           # per-level sampling matrix
                for p in range(P):
                    k = (h * L + l) * P + p
                    ix = ix_base + off[:, 2 * k:2 * k + 1]
                    iy = iy_base + off[:, 2 * k + 1:2 * k + 2]
                    a = aw_heads[h][:, l * P + p:l * P + p + 1]
                    x0 = jnp.floor(ix)
                    y0 = jnp.floor(iy)
                    fx = ix - x0
                    fy = iy - y0
                    x0i = x0.astype(jnp.int32)
                    y0i = y0.astype(jnp.int32)
                    # One index per point; the 4 corners are fixed delta offsets.
                    delta = col - (y0i * Wl + x0i)             # (TQ, HW)
                    vx0 = (x0i >= 0) & (x0i < Wl)
                    vx1 = (x0i >= -1) & (x0i < Wl - 1)         # x0i+1 in [0, Wl)
                    vy0 = (y0i >= 0) & (y0i < Hl)
                    vy1 = (y0i >= -1) & (y0i < Hl - 1)         # y0i+1 in [0, Hl)
                    w00 = jnp.where(vx0 & vy0, a * (1.0 - fx) * (1.0 - fy), 0.0)
                    w01 = jnp.where(vx1 & vy0, a * fx * (1.0 - fy), 0.0)
                    w10 = jnp.where(vx0 & vy1, a * (1.0 - fx) * fy, 0.0)
                    w11 = jnp.where(vx1 & vy1, a * fx * fy, 0.0)
                    S = (S
                         + jnp.where(delta == 0, w00, 0.0)
                         + jnp.where(delta == 1, w01, 0.0)
                         + jnp.where(delta == Wl, w10, 0.0)
                         + jnp.where(delta == Wl + 1, w11, 0.0))
                vh = v[start:start + HW, h * Dh:(h + 1) * Dh]  # (HW, Dh) bf16
                head_accs[h] = head_accs[h] + jnp.dot(
                    S.astype(jnp.bfloat16), vh, preferred_element_type=jnp.float32)

        # One fused output projection instead of H skinny K=Dh matmuls.
        heads = jnp.concatenate(head_accs, axis=-1)            # (TQ, C) f32
        out = jnp.dot(heads.astype(jnp.bfloat16), wo_ref[...],
                      preferred_element_type=jnp.float32) + bo_ref[...]
        out_ref[0] = out

    return kernel


def _pick_tq(Lq, cap=256):
    if Lq <= cap:
        return Lq
    for t in range(cap, 7, -1):
        if Lq % t == 0 and t % 8 == 0:
            return t
    return Lq  # fall back to a single full-extent tile


def ms_deform_attn_pallas(query, input_flatten, reference_points, padding_mask,
                          shapes_list, starts_list, params, H, L, P):
    N, Lq, C = query.shape
    Lin = input_flatten.shape[1]
    WvT, bv, WoffT, boff, WattnT, battn, WoT, bo = params
    shapes_list = [(int(h), int(w)) for h, w in shapes_list]
    starts_list = [int(s) for s in starts_list]
    assert sum(h * w for h, w in shapes_list) == Lin

    maskf = padding_mask.astype(jnp.float32).reshape(N, Lin, 1)
    ref2 = reference_points.reshape(N, Lq, 2 * L)

    # --- stage 1: value projection (bf16 output), once per batch sample ---
    v = pl.pallas_call(
        _make_value_kernel(),
        out_shape=jax.ShapeDtypeStruct((N, Lin, C), jnp.bfloat16),
        grid_spec=pltpu.PrefetchScalarGridSpec(
            num_scalar_prefetch=0,
            grid=(N,),
            in_specs=[
                pl.BlockSpec((1, Lin, C), lambda n: (n, 0, 0)),
                pl.BlockSpec((1, Lin, 1), lambda n: (n, 0, 0)),
                pl.BlockSpec((C, C), lambda n: (0, 0)),
                pl.BlockSpec((1, C), lambda n: (0, 0)),
            ],
            out_specs=pl.BlockSpec((1, Lin, C), lambda n: (n, 0, 0)),
        ),
        compiler_params=pltpu.CompilerParams(dimension_semantics=("parallel",)),
    )(input_flatten, maskf, WvT.astype(jnp.bfloat16), bv.reshape(1, C))

    # --- stage 2: deformable attention over (batch, Lq tiles) ---
    TQ = _pick_tq(Lq)
    n_tq = Lq // TQ
    kernel = _make_main_kernel(TQ, C, H, L, P, shapes_list, starts_list)
    # NOTE: for this toy config C=32 < 128 the output stores are lane-masked;
    # real configs (C=256) are lane-dense and need no change.
    return pl.pallas_call(
        kernel,
        out_shape=jax.ShapeDtypeStruct((N, Lq, C), jnp.float32),
        grid_spec=pltpu.PrefetchScalarGridSpec(
            num_scalar_prefetch=0,
            grid=(N, n_tq),
            in_specs=[
                pl.BlockSpec((1, TQ, C), lambda n, t: (n, t, 0)),
                pl.BlockSpec((1, TQ, 2 * L), lambda n, t: (n, t, 0)),
                pl.BlockSpec((1, Lin, C), lambda n, t: (n, 0, 0)),   # v resident per batch
                pl.BlockSpec((C, H * L * P * 2), lambda n, t: (0, 0)),
                pl.BlockSpec((1, H * L * P * 2), lambda n, t: (0, 0)),
                pl.BlockSpec((C, H * L * P), lambda n, t: (0, 0)),
                pl.BlockSpec((1, H * L * P), lambda n, t: (0, 0)),
                pl.BlockSpec((C, C), lambda n, t: (0, 0)),
                pl.BlockSpec((1, C), lambda n, t: (0, 0)),
            ],
            out_specs=pl.BlockSpec((1, TQ, C), lambda n, t: (n, t, 0)),
        ),
        compiler_params=pltpu.CompilerParams(
            dimension_semantics=("parallel", "parallel"),
            vmem_limit_bytes=32 * 1024 * 1024),
    )(query, ref2, v,
      WoffT, boff.reshape(1, -1), WattnT, battn.reshape(1, -1),
      WoT.astype(jnp.bfloat16), bo.reshape(1, C))


def init_params(key, C, H, L, P):
    """Deterministic parameter init mirroring _reset_parameters()."""
    kv, ko = jax.random.split(key)

    def xavier_uniform(k, fan_out, fan_in):
        a = math.sqrt(6.0 / (fan_in + fan_out))
        return jax.random.uniform(k, (fan_out, fan_in), jnp.float32, -a, a)

    Wv = xavier_uniform(kv, C, C)
    bv = jnp.zeros((C,), jnp.float32)
    Wo = xavier_uniform(ko, C, C)
    bo = jnp.zeros((C,), jnp.float32)

    # sampling_offsets: zero weight, structured bias
    Woff = jnp.zeros((H * L * P * 2, C), jnp.float32)
    thetas = jnp.arange(H, dtype=jnp.float32) * (2.0 * math.pi / H)
    grid = jnp.stack([jnp.cos(thetas), jnp.sin(thetas)], -1)               # (H, 2)
    grid = grid / jnp.max(jnp.abs(grid), axis=-1, keepdims=True)
    grid = jnp.tile(grid.reshape(H, 1, 1, 2), (1, L, P, 1))                # (H, L, P, 2)
    grid = grid * jnp.arange(1, P + 1, dtype=jnp.float32).reshape(1, 1, P, 1)
    boff = grid.reshape(-1)

    # attention_weights: zero weight / zero bias
    Wattn = jnp.zeros((H * L * P, C), jnp.float32)
    battn = jnp.zeros((H * L * P,), jnp.float32)

    # pre-transpose all weights to (in, out) for x @ W
    return (Wv.T, bv, Woff.T, boff, Wattn.T, battn, Wo.T, bo)


def ref_forward(query, input_flatten, reference_points, padding_mask,
                shapes_list, starts_list, params, H, L, P):
    """Pure-JAX f32 reference of the same forward for verification."""
    WvT, bv, WoffT, boff, WattnT, battn, WoT, bo = params
    N, Lq, C = query.shape
    Lin = input_flatten.shape[1]
    Dh = C // H
    value = input_flatten @ WvT + bv
    value = value * (1.0 - padding_mask.astype(jnp.float32))[..., None]
    value = value.reshape(N, Lin, H, Dh)
    off = (query @ WoffT + boff).reshape(N, Lq, H, L, P, 2)
    aw = (query @ WattnT + battn).reshape(N, Lq, H, L * P)
    aw = jax.nn.softmax(aw, axis=-1).reshape(N, Lq, H, L, P)

    out = jnp.zeros((N, Lq, H, Dh), jnp.float32)
    b_idx = jnp.arange(N).reshape(N, 1, 1, 1)
    h_idx = jnp.arange(H).reshape(1, 1, H, 1)
    for l, (Hl, Wl) in enumerate(shapes_list):
        s = starts_list[l]
        flat = value[:, s:s + Hl * Wl]                     # (N, Hl*Wl, H, Dh)
        loc_x = reference_points[:, :, None, l, None, 0] + off[:, :, :, l, :, 0] / Wl
        loc_y = reference_points[:, :, None, l, None, 1] + off[:, :, :, l, :, 1] / Hl
        ix = loc_x * Wl - 0.5
        iy = loc_y * Hl - 0.5
        x0 = jnp.floor(ix)
        y0 = jnp.floor(iy)
        fx = ix - x0
        fy = iy - y0
        x0i = x0.astype(jnp.int32)
        y0i = y0.astype(jnp.int32)
        samp = jnp.zeros((N, Lq, H, P, Dh), jnp.float32)
        for dy, dx, w in [(0, 0, (1 - fx) * (1 - fy)), (0, 1, fx * (1 - fy)),
                          (1, 0, (1 - fx) * fy), (1, 1, fx * fy)]:
            xc = x0i + dx
            yc = y0i + dy
            valid = (xc >= 0) & (xc < Wl) & (yc >= 0) & (yc < Hl)
            xcc = jnp.clip(xc, 0, Wl - 1)
            ycc = jnp.clip(yc, 0, Hl - 1)
            idx = ycc * Wl + xcc
            g = flat[b_idx, idx, h_idx, :]                 # (N, Lq, H, P, Dh)
            samp = samp + jnp.where(valid[..., None], w[..., None], 0.0) * g
        out = out + jnp.sum(aw[:, :, :, l, :, None] * samp, axis=3)
    out = out.reshape(N, Lq, C)
    return out @ WoT + bo


if __name__ == "__main__":
    # small shapes consistent with the module (d_model=32, n_heads=4, n_levels=2, n_points=2)
    N, Lq, C = 2, 16, 32
    H, L, P = 4, 2, 2
    shapes_list = [(8, 8), (4, 4)]
    starts_list = [0, 64]
    Lin = sum(h * w for h, w in shapes_list)

    key = jax.random.PRNGKey(0)
    kq, kx, kr, km, kp = jax.random.split(key, 5)
    query = jax.random.normal(kq, (N, Lq, C), jnp.float32)
    input_flatten = jax.random.normal(kx, (N, Lin, C), jnp.float32)
    reference_points = jax.random.uniform(kr, (N, Lq, L, 2), dtype=jnp.float32)
    padding_mask = jax.random.bernoulli(km, 0.1, (N, Lin))
    params = init_params(kp, C, H, L, P)

    out = ms_deform_attn_pallas(query, input_flatten, reference_points, padding_mask,
                                shapes_list, starts_list, params, H, L, P)
    out = jax.block_until_ready(out)

    ref = ref_forward(query, input_flatten, reference_points, padding_mask,
                      shapes_list, starts_list, params, H, L, P)
    assert out.shape == (N, Lq, C)
    assert jnp.allclose(out, ref, atol=3e-2, rtol=3e-2), float(jnp.max(jnp.abs(out - ref)))
    print("KERNEL_OK")
</pallas_src>

<mosaic_0001>
module attributes {stable_mosaic.version = 11 : i64} {
  func.func @kernel(%arg0: i32, %arg1: memref<1x80x32xf32, #tpu.memory_space<vmem>>, %arg2: memref<1x80x1xf32, #tpu.memory_space<vmem>>, %arg3: memref<32x32xbf16, #tpu.memory_space<vmem>>, %arg4: memref<1x32xf32, #tpu.memory_space<vmem>>, %arg5: memref<1x80x32xbf16, #tpu.memory_space<vmem>>) attributes {dimension_semantics = [#tpu.dimension_semantics<parallel>], iteration_bounds = array<i64: 2>, scalar_prefetch = 0 : i64, scratch_operands = 0 : i64, tpu.core_type = #tpu.core_type<tc>, window_params = [{transform_indices = @transform_0, window_bounds = array<i64: 1, 80, 32>}, {transform_indices = @transform_1, window_bounds = array<i64: 1, 80, 1>}, {pipeline_mode = #tpu.pipeline_mode<synchronous>, transform_indices = @transform_2, window_bounds = array<i64: 32, 32>}, {pipeline_mode = #tpu.pipeline_mode<synchronous>, transform_indices = @transform_3, window_bounds = array<i64: 1, 32>}, {transform_indices = @transform_4, window_bounds = array<i64: 1, 80, 32>}]} {
    %c0 = arith.constant 0 : index
    %c0_0 = arith.constant 0 : index
    %c0_1 = arith.constant 0 : index
    %0 = vector.load %arg1[%c0, %c0_0, %c0_1] : memref<1x80x32xf32, #tpu.memory_space<vmem>>, vector<1x80x32xf32>
    %1 = vector.shape_cast %0 : vector<1x80x32xf32> to vector<80x32xf32>
    %2 = arith.truncf %1 : vector<80x32xf32> to vector<80x32xbf16>
    %c0_2 = arith.constant 0 : index
    %c0_3 = arith.constant 0 : index
    %3 = vector.load %arg3[%c0_2, %c0_3] : memref<32x32xbf16, #tpu.memory_space<vmem>>, vector<32x32xbf16>
    %cst = arith.constant dense<0.000000e+00> : vector<80x32xf32>
    %4 = tpu.matmul %2, %3, %cst {dimension_numbers = #tpu.dot_dimension_numbers<[1], [0], [0], [1], [0, 0, 1, 1], [], []>} : vector<80x32xbf16>, vector<32x32xbf16>, vector<80x32xf32> -> vector<80x32xf32>
    %c0_4 = arith.constant 0 : index
    %c0_5 = arith.constant 0 : index
    %5 = vector.load %arg4[%c0_4, %c0_5] : memref<1x32xf32, #tpu.memory_space<vmem>>, vector<1x32xf32>
    %6 = vector.broadcast %5 : vector<1x32xf32> to vector<80x32xf32>
    %7 = arith.addf %4, %6 : vector<80x32xf32>
    %c0_6 = arith.constant 0 : index
    %c0_7 = arith.constant 0 : index
    %c0_8 = arith.constant 0 : index
    %8 = vector.load %arg2[%c0_6, %c0_7, %c0_8] : memref<1x80x1xf32, #tpu.memory_space<vmem>>, vector<1x80x1xf32>
    %9 = vector.shape_cast %8 : vector<1x80x1xf32> to vector<80x1xf32>
    %cst_9 = arith.constant 1.000000e+00 : f32
    %10 = vector.broadcast %cst_9 : f32 to vector<80x1xf32>
    %11 = arith.subf %10, %9 : vector<80x1xf32>
    %12 = vector.broadcast %11 : vector<80x1xf32> to vector<80x32xf32>
    %13 = arith.mulf %7, %12 : vector<80x32xf32>
    %14 = arith.truncf %13 : vector<80x32xf32> to vector<80x32xbf16>
    %c0_10 = arith.constant 0 : index
    %c0_11 = arith.constant 0 : index
    %c0_12 = arith.constant 0 : index
    %15 = vector.load %arg5[%c0_10, %c0_11, %c0_12] : memref<1x80x32xbf16, #tpu.memory_space<vmem>>, vector<1x80x32xbf16>
    %16 = vector.shape_cast %15 : vector<1x80x32xbf16> to vector<80x32xbf16>
    %17 = vector.shape_cast %14 : vector<80x32xbf16> to vector<1x80x32xbf16>
    tpu.vector_store %arg5[%c0_10, %c0_11, %c0_12], %17 {strides = array<i32>} : memref<1x80x32xbf16, #tpu.memory_space<vmem>>, vector<1x80x32xbf16>,
    return
  }
  func.func @transform_0(%arg0: i32) -> (i32, i32, i32) {
    %c0_i32 = arith.constant 0 : i32
    %c0_i32_0 = arith.constant 0 : i32
    %c0_i32_1 = arith.constant 0 : i32
    return %arg0, %c0_i32, %c0_i32_0 : i32, i32, i32
  }
  func.func @transform_1(%arg0: i32) -> (i32, i32, i32) {
    %c0_i32 = arith.constant 0 : i32
    %c0_i32_0 = arith.constant 0 : i32
    %c0_i32_1 = arith.constant 0 : i32
    return %arg0, %c0_i32, %c0_i32_0 : i32, i32, i32
  }
  func.func @transform_2(%arg0: i32) -> (i32, i32) {
    %c0_i32 = arith.constant 0 : i32
    %c0_i32_0 = arith.constant 0 : i32
    %c0_i32_1 = arith.constant 0 : i32
    return %c0_i32, %c0_i32_0 : i32, i32
  }
  func.func @transform_3(%arg0: i32) -> (i32, i32) {
    %c0_i32 = arith.constant 0 : i32
    %c0_i32_0 = arith.constant 0 : i32
    %c0_i32_1 = arith.constant 0 : i32
    return %c0_i32, %c0_i32_0 : i32, i32
  }
  func.func @transform_4(%arg0: i32) -> (i32, i32, i32) {
    %c0_i32 = arith.constant 0 : i32
    %c0_i32_0 = arith.constant 0 : i32
    %c0_i32_1 = arith.constant 0 : i32
    return %arg0, %c0_i32, %c0_i32_0 : i32, i32, i32
  }
}

</mosaic_0001>

<llo_original>
// kernel: tpu_custom_call.1
$region0: #{tpu_custom_call.1}
  #allocation0 [shape = 'u32[]', space=smem, size = 0x4, offset = 0x4, fixed_abs, tag = 'smem constant byte address 0x4 - core index']
  #allocation1 [shape = 'u32[144,128]{1,0:T(1,128)}', space=vmem, size = 0x12000, scoped, tag = 'internal scratch']
  %s0 = inlined_call_operand.vmem [shape: f32[2,80,32], index: 0, kind: input, shape index: {}]
  %s1 = inlined_call_operand.vmem [shape: f32[2,80,1], index: 1, kind: input, shape index: {}]
  %s2 = inlined_call_operand.vmem [shape: bf16[32,32], index: 2, kind: input, shape index: {}]
  %s3 = inlined_call_operand.vmem [shape: f32[1,32], index: 3, kind: input, shape index: {}]
  %s4 = inlined_call_operand.vmem [shape: bf16[2,80,32], index: 4, kind: output, shape index: {}]
  %s5 = sld [smem:[#allocation0]]
  $region49: #{tpu_custom_call.1} parent=0
    _
  %s7 = ssub.s32 1, %s5
  %s8 = scalar_select 0, %s7, %s5
  loop: start=0, step=1, limit=4
  $region2: #{tpu_custom_call.1} parent=0 // loop_pre_header
    _
  $region3: #{tpu_custom_call.1} parent=0 // loop_header
    %s10 = sphi 0, %s14
    %p11 = scmp.ge.s32.totalorder %s10, 4
    %s20 = sphi 0, %s22
    %s23 = sphi 0, %s20
    %s24 = sphi 0, %s23
    %s40 = sphi 0, %s24
    %s46 = sphi 0, %s48
    %s49 = sphi 0, %s46
    %s50 = sphi 0, %s49
    %s66 = sphi 0, %s50
    %s70 = sphi 0, %s70
    %s72 = sphi 0, %s70
    %s73 = sphi 0, %s72
    %s87 = sphi 0, %s73
    %s91 = sphi 0, %s91
    %s93 = sphi 0, %s91
    %s94 = sphi 0, %s93
    %s108 = sphi 0, %s94
    %s114 = sphi 0, %s116
    %s117 = sphi 0, %s114
    %s118 = sphi 0, %s117
    %s134 = sphi 0, %s118
  $region4: #{tpu_custom_call.1} parent=0 // loop_header_branch
    %13 = sbr.rel (%p11) target = $region8
  $region5: #{tpu_custom_call.1} parent=0 // loop_body
    %s15 = ssub.s32 %s10, 1
    %s16 = ssub.s32 %s10, 2
    %s17 = sadd.s32 %s10, 1
    %s18 = ssub.s32 %s10, %s17
    %p19 = scmp.eq.s32.totalorder %s18, 0
    %s21 = sadd.s32 %s20, 1
    %s22 = scalar_select %p19, %s20, %s21
    %p25 = pneg %p19
    %p26 = scmp.eq.s32.totalorder %s10, 1
    %p27 = por %p25, %p26
    %p28 = scmp.ne.s32.totalorder %s20, %s23
    %p29 = scmp.eq.s32.totalorder %s10, 0
    %p30 = por %p28, %p29
    %p31 = scmp.ne.s32.totalorder %s20, %s23
    %p32 = scmp.eq.s32.totalorder %s15, 1
    %p33 = por %p31, %p32
    %p34 = scmp.ne.s32.totalorder %s23, %s24
    %p35 = scmp.eq.s32.totalorder %s15, 0
    %p36 = por %p34, %p35
    %p37 = scmp.ne.s32.totalorder %s23, %s24
    %p38 = scmp.eq.s32.totalorder %s16, 1
    %p39 = por %p37, %p38
    %p41 = scmp.ne.s32.totalorder %s24, %s40
    %p42 = scmp.eq.s32.totalorder %s16, 0
    %p43 = por %p41, %p42
    %s44 = ssub.s32 %s10, %s17
    %p45 = scmp.eq.s32.totalorder %s44, 0
    %s47 = sadd.s32 %s46, 1
    %s48 = scalar_select %p45, %s46, %s47
    %p51 = pneg %p45
    %p52 = scmp.eq.s32.totalorder %s10, 1
    %p53 = por %p51, %p52
    %p54 = scmp.ne.s32.totalorder %s46, %s49
    %p55 = scmp.eq.s32.totalorder %s10, 0
    %p56 = por %p54, %p55
    %p57 = scmp.ne.s32.totalorder %s46, %s49
    %p58 = scmp.eq.s32.totalorder %s15, 1
    %p59 = por %p57, %p58
    %p60 = scmp.ne.s32.totalorder %s49, %s50
    %p61 = scmp.eq.s32.totalorder %s15, 0
    %p62 = por %p60, %p61
    %p63 = scmp.ne.s32.totalorder %s49, %s50
    %p64 = scmp.eq.s32.totalorder %s16, 1
    %p65 = por %p63, %p64
    %p67 = scmp.ne.s32.totalorder %s50, %s66
    %p68 = scmp.eq.s32.totalorder %s16, 0
    %p69 = por %p67, %p68
    %s71 = sadd.s32 %s70, 1
    %p74 = scmp.eq.s32.totalorder %s10, 1
    %p75 = scmp.ne.s32.totalorder %s70, %s72
    %p76 = scmp.eq.s32.totalorder %s10, 0
    %p77 = por %p75, %p76
    %p78 = scmp.ne.s32.totalorder %s70, %s72
    %p79 = scmp.eq.s32.totalorder %s15, 1
    %p80 = por %p78, %p79
    %p81 = scmp.ne.s32.totalorder %s72, %s73
    %p82 = scmp.eq.s32.totalorder %s15, 0
    %p83 = por %p81, %p82
    %p84 = scmp.ne.s32.totalorder %s72, %s73
    %p85 = scmp.eq.s32.totalorder %s16, 1
    %p86 = por %p84, %p85
    %p88 = scmp.ne.s32.totalorder %s73, %s87
    %p89 = scmp.eq.s32.totalorder %s16, 0
    %p90 = por %p88, %p89
    %s92 = sadd.s32 %s91, 1
    %p95 = scmp.eq.s32.totalorder %s10, 1
    %p96 = scmp.ne.s32.totalorder %s91, %s93
    %p97 = scmp.eq.s32.totalorder %s10, 0
    %p98 = por %p96, %p97
    %p99 = scmp.ne.s32.totalorder %s91, %s93
    %p100 = scmp.eq.s32.totalorder %s15, 1
    %p101 = por %p99, %p100
    %p102 = scmp.ne.s32.totalorder %s93, %s94
    %p103 = scmp.eq.s32.totalorder %s15, 0
    %p104 = por %p102, %p103
    %p105 = scmp.ne.s32.totalorder %s93, %s94
    %p106 = scmp.eq.s32.totalorder %s16, 1
    %p107 = por %p105, %p106
    %p109 = scmp.ne.s32.totalorder %s94, %s108
    %p110 = scmp.eq.s32.totalorder %s16, 0
    %p111 = por %p109, %p110
    %s112 = ssub.s32 %s10, %s17
    %p113 = scmp.eq.s32.totalorder %s112, 0
    %s115 = sadd.s32 %s114, 1
    %s116 = scalar_select %p113, %s114, %s115
    %p119 = pneg %p113
    %p120 = scmp.eq.s32.totalorder %s10, 1
    %p121 = por %p119, %p120
    %p122 = scmp.ne.s32.totalorder %s114, %s117
    %p123 = scmp.eq.s32.totalorder %s10, 0
    %p124 = por %p122, %p123
    %p125 = scmp.ne.s32.totalorder %s114, %s117
    %p126 = scmp.eq.s32.totalorder %s15, 1
    %p127 = por %p125, %p126
    %p128 = scmp.ne.s32.totalorder %s117, %s118
    %p129 = scmp.eq.s32.totalorder %s15, 0
    %p130 = por %p128, %p129
    %p131 = scmp.ne.s32.totalorder %s117, %s118
    %p132 = scmp.eq.s32.totalorder %s16, 1
    %p133 = por %p131, %p132
    %p135 = scmp.ne.s32.totalorder %s118, %s134
    %p136 = scmp.eq.s32.totalorder %s16, 0
    %p137 = por %p135, %p136
    %p138 = scmp.le.s32.totalorder 1, %s10
    %p139 = scmp.lt.s32.totalorder %s10, 3
    %p140 = pnand %p138, %p139
    %p141 = pneg %p140
    // Predicated region
    $region9: #{tpu_custom_call.1} parent=5 // pred_check
      _
    $region10: #{tpu_custom_call.1} parent=5 // pred_check_branch
      %143 = sbr.rel (%p140) target = $region12
    $region11: #{tpu_custom_call.1} parent=5 // pred_region
      %s144 = ssub.s32 %s10, 1
      // Predicated region
      $region13: #{tpu_custom_call.1} parent=11 // pred_check
        %p145 = pneg %p83
      $region14: #{tpu_custom_call.1} parent=11 // pred_check_branch
        %147 = sbr.rel (%p145) target = $region16
      $region15: #{tpu_custom_call.1} parent=11 // pred_region
        _
      $region16: #{tpu_custom_call.1} parent=11 // pred_fallthru
        _
      // Predicated region
      $region17: #{tpu_custom_call.1} parent=11 // pred_check
        %p148 = pneg %p104
      $region18: #{tpu_custom_call.1} parent=11 // pred_check_branch
        %150 = sbr.rel (%p148) target = $region20
      $region19: #{tpu_custom_call.1} parent=11 // pred_region
        _
      $region20: #{tpu_custom_call.1} parent=11 // pred_fallthru
        _
    $region12: #{tpu_custom_call.1} parent=5 // pred_fallthru
      _
    %p151 = scmp.lt.s32.totalorder %s10, 2
    // Predicated region
    $region21: #{tpu_custom_call.1} parent=5 // pred_check
      %p152 = pneg %p151
    $region22: #{tpu_custom_call.1} parent=5 // pred_check_branch
      %154 = sbr.rel (%p152) target = $region24
    $region23: #{tpu_custom_call.1} parent=5 // pred_region
      // Predicated region
      $region25: #{tpu_custom_call.1} parent=23 // pred_check
        %p155 = pneg %p30
      $region26: #{tpu_custom_call.1} parent=23 // pred_check_branch
        %157 = sbr.rel (%p155) target = $region28
      $region27: #{tpu_custom_call.1} parent=23 // pred_region
        %p158 = scmp.lt.s32.totalorder %s10, 1
        %s159 = scalar_select %p158, %s10, 1
        %s160 = smul.addr %s159, 10
        %s161 = smul.addr %s160, 8
        %s162 = scalar_lea.vmem %s0, %s161
      $region28: #{tpu_custom_call.1} parent=23 // pred_fallthru
        _
      // Predicated region
      $region29: #{tpu_custom_call.1} parent=23 // pred_check
        %p163 = pneg %p56
      $region30: #{tpu_custom_call.1} parent=23 // pred_check_branch
        %165 = sbr.rel (%p163) target = $region32
      $region31: #{tpu_custom_call.1} parent=23 // pred_region
        %p166 = scmp.lt.s32.totalorder %s10, 1
        %s167 = scalar_select %p166, %s10, 1
        %s168 = smul.addr %s167, 10
        %s169 = smul.addr %s168, 8
        %s170 = scalar_lea.vmem %s1, %s169
      $region32: #{tpu_custom_call.1} parent=23 // pred_fallthru
        _
    $region24: #{tpu_custom_call.1} parent=5 // pred_fallthru
      _
    %p171 = scmp.le.s32.totalorder 1, %s10
    %p172 = scmp.lt.s32.totalorder %s10, 3
    %p173 = pnand %p171, %p172
    %p174 = pneg %p173
    // Predicated region
    $region33: #{tpu_custom_call.1} parent=5 // pred_check
      _
    $region34: #{tpu_custom_call.1} parent=5 // pred_check_branch
      %176 = sbr.rel (%p173) target = $region36
    $region35: #{tpu_custom_call.1} parent=5 // pred_region
      %s177 = ssub.s32 %s10, 1
      %p178 = scmp.lt.s32.totalorder %s15, 1
      %s179 = scalar_select %p178, %s15, 1
      %s180 = smul.addr %s179, 10
      %s181 = smul.addr %s180, 8
      %s182 = scalar_lea.vmem %s0, %s181
      %p183 = pneg %p36
      %p184 = pneg %p33
      %p185 = scmp.lt.s32.totalorder %s15, 1
      %s186 = scalar_select %p185, %s15, 1
      %s187 = smul.addr %s186, 10
      %s188 = smul.addr %s187, 8
      %s189 = scalar_lea.vmem %s1, %s188
      %p190 = pneg %p62
      %p191 = pneg %p59
      %p192 = pneg %p83
      %p193 = pneg %p80
      %p194 = pneg %p104
      %p195 = pneg %p101
      %p196 = pneg %p130
      %p197 = pneg %p127
      %p198 = scmp.lt.s32.totalorder %s15, 1
      %s199 = scalar_select %p198, %s15, 1
      %s200 = smul.addr %s199, 10
      %s201 = smul.addr %s200, 4
      %s202 = scalar_lea.vmem %s4, %s201
      %p203 = scmp.lt.s32.totalorder %s15, 1
      %s204 = scalar_select %p203, %s15, 1
      %s205 = smul.addr %s204, 10
      %s206 = smul.addr %s205, 8
      %s207 = scalar_lea.vmem %s0, %s206
      %p208 = scmp.lt.s32.totalorder %s15, 1
      %s209 = scalar_select %p208, %s15, 1
      %s210 = smul.addr %s209, 10
      %s211 = smul.addr %s210, 8
      %s212 = scalar_lea.vmem %s1, %s211
      %p213 = scmp.lt.s32.totalorder %s15, 1
      %s214 = scalar_select %p213, %s15, 1
      %s215 = smul.addr %s214, 10
      %s216 = smul.addr %s215, 4
      %s217 = scalar_lea.vmem %s4, %s216
      %v219 = vld [vmem:[%s207] sm:$0xff]
      %v220 = vld [vmem:[%s207 + $0x8] sm:$0xff]
      %v221 = vld [vmem:[%s207 + $0x10] sm:$0xff]
      %v222 = vld [vmem:[%s207 + $0x18] sm:$0xff]
      %v223 = vld [vmem:[%s207 + $0x20] sm:$0xff]
      %v224 = vld [vmem:[%s207 + $0x28] sm:$0xff]
      %v225 = vld [vmem:[%s207 + $0x30] sm:$0xff]
      %v226 = vld [vmem:[%s207 + $0x38] sm:$0xff]
      %v227 = vld [vmem:[%s207 + $0x40] sm:$0xff]
      %v228 = vld [vmem:[%s207 + $0x48] sm:$0xff]
      %v229 = vpack.c.bf16 %v220, %v219
      %v230 = vpack.c.bf16 %v222, %v221
      %v231 = vpack.c.bf16 %v224, %v223
      %v232 = vpack.c.bf16 %v226, %v225
      %v233 = vpack.c.bf16 %v228, %v227
      %v234 = vld [vmem:[%s2] sm:$0xf]
      %v235 = vld [vmem:[%s2 + $0x4] sm:$0xf]
      %v236 = vld [vmem:[%s2 + $0x8] sm:$0xf]
      %v237 = vld [vmem:[%s2 + $0xc] sm:$0xf]
      %v238 = vld [vmem:[%s3] sm:$0x1]
      %v240 = vlaneseq
      %v241 = vshrl.u32 %v240, 7
      %v242 = vsub.s32 0, %v241
      %v243 = vrot.slane %v238, %v242
      %v249 = vunpack.c.l.b16 %v234
      %v250 = vunpack.c.l.b16 %v235
      %v251 = vunpack.c.l.b16 %v236
      %v252 = vunpack.c.l.b16 %v237
      %v253 = vpack.c.b16 %v250, %v249
      %v254 = vpack.c.b16 %v252, %v251
      %vm257 = vcmask 261120
      %v259 = vsel %vm257, %v229, 0
      %v262 = vsel %vm257, %v230, 0
      %v265 = vsel %vm257, %v231, 0
      %v268 = vsel %vm257, %v232, 0
      %v271 = vsel %vm257, %v233, 0
      %273 = vmatprep.subr.bf16.mxu0 0
      %274 = vmatpush1.bf16.msra.mxu0 %v253
      %275 = vmatprep.subr.bf16.mxu0 0
      %276 = vmatpush1.bf16.msra.mxu0 %v254
      %277 = vmatprep.subr.bf16.mxu0 0
      %278 = vmatpush1.bf16.msra.mxu0 0
      %279 = vmatprep.subr.bf16.mxu0 0
      %280 = vmatpush1.bf16.msra.mxu0 0
      %281 = vmatprep.subr.bf16.mxu0 0
      %282 = vmatpush1.bf16.msra.mxu0 0
      %283 = vmatprep.subr.bf16.mxu0 0
      %284 = vmatpush1.bf16.msra.mxu0 0
      %285 = vmatprep.subr.bf16.mxu0 0
      %286 = vmatpush1.bf16.msra.mxu0 0
      %287 = vmatprep.subr.bf16.mxu0 0
      %288 = vmatpush1.bf16.msra.mxu0 0
      %289 = vmatprep.subr.bf16.mxu0 0
      %290 = vmatpush1.bf16.msra.mxu0 0
      %291 = vmatprep.subr.bf16.mxu0 0
      %292 = vmatpush1.bf16.msra.mxu0 0
      %293 = vmatprep.subr.bf16.mxu0 0
      %294 = vmatpush1.bf16.msra.mxu0 0
      %295 = vmatprep.subr.bf16.mxu0 0
      %296 = vmatpush1.bf16.msra.mxu0 0
      %297 = vmatprep.subr.bf16.mxu0 0
      %298 = vmatpush1.bf16.msra.mxu0 0
      %299 = vmatprep.subr.bf16.mxu0 0
      %300 = vmatpush1.bf16.msra.mxu0 0
      %301 = vmatprep.subr.bf16.mxu0 0
      %302 = vmatpush1.bf16.msra.mxu0 0
      %303 = vmatprep.subr.bf16.mxu0 0
      %304 = vmatpush1.bf16.msra.mxu0 0
      %305 = vmatprep.mubr.bf16.mxu0 0
      %306 = vmatmul.mubr.bf16.gmra.mrb[0].mxu0 %v259
      %v307 = vpop.f32.mrb[0].mxu0
      %v308 = vadd.f32 %v243, %v307
      %v309 = vpop.f32.mrb[0].mxu0
      %v310 = vpop.f32.mrb[0].mxu0
      %v311 = vadd.f32 %v243, %v310
      %v312 = vpop.f32.mrb[0].mxu0
      %313 = vmatprep.mubr.bf16.mxu0 0
      %314 = vmatmul.mubr.bf16.gmra.mrb[0].mxu0 %v262
      %v315 = vpop.f32.mrb[0].mxu0
      %v316 = vadd.f32 %v243, %v315
      %v317 = vpop.f32.mrb[0].mxu0
      %v318 = vpop.f32.mrb[0].mxu0
      %v319 = vadd.f32 %v243, %v318
      %v320 = vpop.f32.mrb[0].mxu0
      %321 = vmatprep.mubr.bf16.mxu0 0
      %322 = vmatmul.mubr.bf16.gmra.mrb[0].mxu0 %v265
      %v323 = vpop.f32.mrb[0].mxu0
      %v324 = vadd.f32 %v243, %v323
      %v325 = vpop.f32.mrb[0].mxu0
      %v326 = vpop.f32.mrb[0].mxu0
      %v327 = vadd.f32 %v243, %v326
      %v328 = vpop.f32.mrb[0].mxu0
      %329 = vmatprep.mubr.bf16.mxu0 0
      %330 = vmatmul.mubr.bf16.gmra.mrb[0].mxu0 %v268
      %v331 = vpop.f32.mrb[0].mxu0
      %v332 = vadd.f32 %v243, %v331
      %v333 = vpop.f32.mrb[0].mxu0
      %v334 = vpop.f32.mrb[0].mxu0
      %v335 = vadd.f32 %v243, %v334
      %v336 = vpop.f32.mrb[0].mxu0
      %337 = vmatprep.mubr.bf16.mxu0 0
      %338 = vmatmul.mubr.bf16.gmra.mrb[0].mxu0 %v271
      %v339 = vpop.f32.mrb[0].mxu0
      %v340 = vadd.f32 %v243, %v339
      %v341 = vpop.f32.mrb[0].mxu0
      %v342 = vpop.f32.mrb[0].mxu0
      %v343 = vadd.f32 %v243, %v342
      %v344 = vpop.f32.mrb[0].mxu0
      %345 = vdwg.mxu0
      %v346 = vld [vmem:[%s212] sm:$0xff]
      %v347 = vld [vmem:[%s212 + $0x8] sm:$0xff]
      %v348 = vld [vmem:[%s212 + $0x10] sm:$0xff]
      %v349 = vld [vmem:[%s212 + $0x18] sm:$0xff]
      %v350 = vld [vmem:[%s212 + $0x20] sm:$0xff]
      %v351 = vld [vmem:[%s212 + $0x28] sm:$0xff]
      %v352 = vld [vmem:[%s212 + $0x30] sm:$0xff]
      %v353 = vld [vmem:[%s212 + $0x38] sm:$0xff]
      %v354 = vld [vmem:[%s212 + $0x40] sm:$0xff]
      %v355 = vld [vmem:[%s212 + $0x48] sm:$0xff]
      %v356 = vsub.f32 1.0, %v346
      %v357 = vsub.f32 1.0, %v347
      %v358 = vsub.f32 1.0, %v348
      %v359 = vsub.f32 1.0, %v349
      %v360 = vsub.f32 1.0, %v350
      %v361 = vsub.f32 1.0, %v351
      %v362 = vsub.f32 1.0, %v352
      %v363 = vsub.f32 1.0, %v353
      %v364 = vsub.f32 1.0, %v354
      %v365 = vsub.f32 1.0, %v355
      %367 = vset.pattern.permute.xlu0 0
      %368 = vperm.xlu0 %367, %v356
      %v369 = vpop.permute.xlu0 %368
      %372 = vset.pattern.permute.xlu0 0
      %373 = vperm.xlu0 %372, %v357
      %v374 = vpop.permute.xlu0 %373
      %377 = vset.pattern.permute.xlu0 0
      %378 = vperm.xlu0 %377, %v358
      %v379 = vpop.permute.xlu0 %378
      %382 = vset.pattern.permute.xlu0 0
      %383 = vperm.xlu0 %382, %v359
      %v384 = vpop.permute.xlu0 %383
      %387 = vset.pattern.permute.xlu0 0
      %388 = vperm.xlu0 %387, %v360
      %v389 = vpop.permute.xlu0 %388
      %392 = vset.pattern.permute.xlu0 0
      %393 = vperm.xlu0 %392, %v361
      %v394 = vpop.permute.xlu0 %393
      %397 = vset.pattern.permute.xlu0 0
      %398 = vperm.xlu0 %397, %v362
      %v399 = vpop.permute.xlu0 %398
      %402 = vset.pattern.permute.xlu0 0
      %403 = vperm.xlu0 %402, %v363
      %v404 = vpop.permute.xlu0 %403
      %407 = vset.pattern.permute.xlu0 0
      %408 = vperm.xlu0 %407, %v364
      %v409 = vpop.permute.xlu0 %408
      %412 = vset.pattern.permute.xlu0 0
      %413 = vperm.xlu0 %412, %v365
      %v414 = vpop.permute.xlu0 %413
      %v416 = vmul.f32 %v308, %v369
      %v417 = vmul.f32 %v311, %v374
      %v418 = vmul.f32 %v316, %v379
      %v419 = vmul.f32 %v319, %v384
      %v420 = vmul.f32 %v324, %v389
      %v421 = vmul.f32 %v327, %v394
      %v422 = vmul.f32 %v332, %v399
      %v423 = vmul.f32 %v335, %v404
      %v424 = vmul.f32 %v340, %v409
      %v425 = vmul.f32 %v343, %v414
      %v426 = vpack.c.bf16 %v417, %v416
      %v427 = vpack.c.bf16 %v419, %v418
      %v428 = vpack.c.bf16 %v421, %v420
      %v429 = vpack.c.bf16 %v423, %v422
      %v430 = vpack.c.bf16 %v425, %v424
      %v436 = vunpack.c.l.b16 %v426
      %v437 = vunpack.c.h.b16 %v426
      %v438 = vunpack.c.l.b16 %v427
      %v439 = vunpack.c.h.b16 %v427
      %v440 = vunpack.c.l.b16 %v428
      %v441 = vunpack.c.h.b16 %v428
      %v442 = vunpack.c.l.b16 %v429
      %v443 = vunpack.c.h.b16 %v429
      %v444 = vunpack.c.l.b16 %v430
      %v445 = vunpack.c.h.b16 %v430
      %v446 = vpack.c.b16 %v436, %v436
      %v447 = vpack.c.b16 %v437, %v437
      %v448 = vpack.c.b16 %v438, %v438
      %v449 = vpack.c.b16 %v439, %v439
      %v450 = vpack.c.b16 %v440, %v440
      %v451 = vpack.c.b16 %v441, %v441
      %v452 = vpack.c.b16 %v442, %v442
      %v453 = vpack.c.b16 %v443, %v443
      %v454 = vpack.c.b16 %v444, %v444
      %v455 = vpack.c.b16 %v445, %v445
      %vm466 = vcmask 257024
      %467 = vst.msk [vmem:[%s217] sm:$0xf] %vm466, %v446
      %468 = vst.msk [vmem:[%s217 + $0x4] sm:$0xf] %vm466, %v447
      %469 = vst.msk [vmem:[%s217 + $0x8] sm:$0xf] %vm466, %v448
      %470 = vst.msk [vmem:[%s217 + $0xc] sm:$0xf] %vm466, %v449
      %471 = vst.msk [vmem:[%s217 + $0x10] sm:$0xf] %vm466, %v450
      %472 = vst.msk [vmem:[%s217 + $0x14] sm:$0xf] %vm466, %v451
      %473 = vst.msk [vmem:[%s217 + $0x18] sm:$0xf] %vm466, %v452
      %474 = vst.msk [vmem:[%s217 + $0x1c] sm:$0xf] %vm466, %v453
      %475 = vst.msk [vmem:[%s217 + $0x20] sm:$0xf] %vm466, %v454
      %476 = vst.msk [vmem:[%s217 + $0x24] sm:$0xf] %vm466, %v455
      %p477 = scmp.lt.s32.totalorder %s15, 1
      %s478 = scalar_select %p477, %s15, 1
      %s479 = smul.addr %s478, 10
      %s480 = smul.addr %s479, 4
      %s481 = scalar_lea.vmem %s4, %s480
      // Predicated region
      $region37: #{tpu_custom_call.1} parent=35 // pred_check
        %p482 = pneg %p127
      $region38: #{tpu_custom_call.1} parent=35 // pred_check_branch
        %484 = sbr.rel (%p482) target = $region40
      $region39: #{tpu_custom_call.1} parent=35 // pred_region
        _
      $region40: #{tpu_custom_call.1} parent=35 // pred_fallthru
        _
    $region36: #{tpu_custom_call.1} parent=5 // pred_fallthru
      _
    %p485 = scmp.le.s32.totalorder 2, %s10
    // Predicated region
    $region41: #{tpu_custom_call.1} parent=5 // pred_check
      %p486 = pneg %p485
    $region42: #{tpu_custom_call.1} parent=5 // pred_check_branch
      %488 = sbr.rel (%p486) target = $region44
    $region43: #{tpu_custom_call.1} parent=5 // pred_region
      %s489 = ssub.s32 %s10, 2
      // Predicated region
      $region45: #{tpu_custom_call.1} parent=43 // pred_check
        %p490 = pneg %p133
      $region46: #{tpu_custom_call.1} parent=43 // pred_check_branch
        %492 = sbr.rel (%p490) target = $region48
      $region47: #{tpu_custom_call.1} parent=43 // pred_region
        %p493 = scmp.lt.s32.totalorder %s16, 1
        %s494 = scalar_select %p493, %s16, 1
        %s495 = smul.addr %s494, 10
        %s496 = smul.addr %s495, 4
        %s497 = scalar_lea.vmem %s4, %s496
      $region48: #{tpu_custom_call.1} parent=43 // pred_fallthru
        _
    $region44: #{tpu_custom_call.1} parent=5 // pred_fallthru
      _
  $region6: #{tpu_custom_call.1} parent=0 // loop_footer
    %s14 = sadd.s32 1, %s10
  $region7: #{tpu_custom_call.1} parent=0 // loop_footer_branch
    %9 = sbr.rel target = $region3
  $region8: #{tpu_custom_call.1} parent=0 // loop_exit
    _

</llo_original>
